<compile_context>
chip_gen: v6e
topology: v6e:2x2x1
jax: 0.10.0
libtpu: 0.0.40
codegen_flags: <defaults>
</compile_context>

<pallas_src>
import math

import jax
import jax.numpy as jnp
from jax import lax
from jax.experimental import pallas as pl
from jax.experimental.pallas import tpu as pltpu

_LANE = 128
_MAX_WIDTH = 4096

_INV_SQRT2 = 0.7071067811865476

# Abramowitz & Stegun 7.1.26 erf coefficients (|error| <= 1.5e-7).
_ERF_P = 0.3275911
_ERF_A1 = 0.254829592
_ERF_A2 = -0.284496736
_ERF_A3 = 1.421413741
_ERF_A4 = -1.453152027
_ERF_A5 = 1.061405429


def _gelu_erf_kernel(x_ref, o_ref):
    xf = x_ref[...].astype(jnp.float32)
    z = xf * _INV_SQRT2
    a = jnp.abs(z)
    # erf(a) = 1 - P(t) * exp(-a^2),  t = 1/(1 + p*a)   (a >= 0)
    # exp and the divide go to the EUP (its own bundle slot); ~5 FMAs on VALU.
    t = 1.0 / (1.0 + _ERF_P * a)
    poly = t * (_ERF_A1 + t * (_ERF_A2 + t * (_ERF_A3 + t * (_ERF_A4 + t * _ERF_A5))))
    erf_abs = 1.0 - poly * jnp.exp(-(a * a))
    erf_z = jnp.where(z < 0.0, -erf_abs, erf_abs)
    o_ref[...] = (xf * (0.5 * (1.0 + erf_z))).astype(o_ref.dtype)


def _sublane_multiple(dtype):
    """Native packed-tile row multiple: 8 for 32-bit, 16 for 16-bit, 32 for 8-bit."""
    bits = jnp.dtype(dtype).itemsize * 8
    if bits >= 32:
        return 8
    if bits == 16:
        return 16
    return 32


def _chip_config():
    """(target_block_bytes, vmem_limit_bytes, min_grid_steps) per TPU generation."""
    vmem = None
    try:
        vmem = int(pltpu.get_tpu_info().vmem_capacity_bytes)
    except Exception:
        vmem = None
    kind = ""
    try:
        kind = jax.devices()[0].device_kind.lower()
    except Exception:
        pass
    # v7x: 64 MiB VMEM per TensorCore, 2 TCs/chip.  v5e/v6e: 128 MiB, 1 TC.
    is_v7 = ("v7" in kind) or ("7x" in kind) or (vmem is not None and vmem <= (64 << 20))
    if is_v7:
        target_block = 5 << 19        # ~2.5 MiB blocks
        vmem_limit = 32 << 20         # keep well under 64 MiB physical
        min_steps = 4                 # >= 2 grid steps per TensorCore
    else:
        target_block = 6 << 20        # bigger blocks on 128 MiB VMEM chips
        vmem_limit = 64 << 20
        min_steps = 1                 # 1 TC: no forced split
    if vmem is not None:
        vmem_limit = min(vmem_limit, max(16 << 20, vmem // 2))
    return target_block, vmem_limit, min_steps


def _factorize(n, sub):
    """Pick (rows, width, pad): width a wide multiple of 128 (<= 4096),
    zero padding whenever any exact factorization exists."""
    widths = range(_MAX_WIDTH, _LANE - 1, -_LANE)
    # Pass 1: exact factorization with sublane-aligned rows (best layout).
    for w in widths:
        if n % w == 0 and (n // w) % sub == 0:
            return n // w, w, 0
    # Pass 2: exact factorization; unaligned rows are fine — the partial edge
    # block is masked by Pallas, so still exactly 1 read + 1 write of HBM.
    for w in widths:
        if n % w == 0:
            return n // w, w, 0
    # Pass 3 (rare: n not a multiple of 128): pad the flat array up to a full
    # packed tile.  Costs an extra pad + slice pass; hit only by odd sizes.
    tile = sub * _LANE
    n_pad = pl.cdiv(n, tile) * tile
    for w in widths:
        if n_pad % w == 0 and (n_pad // w) % sub == 0:
            return n_pad // w, w, n_pad - n
    return n_pad // _LANE, _LANE, n_pad - n


def _choose_block_rows(rows, width, itemsize, sub, min_steps, target_block_bytes):
    """Block rows: multiple of `sub`, block <= target bytes, >= min_steps grid
    steps when the array is big enough (2-TC chips)."""
    budget_rows = max(sub, (target_block_bytes // (width * itemsize)) // sub * sub)
    if rows <= sub or (min_steps <= 1 and rows <= budget_rows):
        return rows  # single block along rows ("equal full dim" satisfies tiling)
    cap = budget_rows
    if min_steps > 1 and (rows // min_steps) >= sub:
        cap = min(cap, (rows // min_steps) // sub * sub)
    block_rows = min(cap, (rows // sub) * sub)
    return max(block_rows, sub)


def gelu_erf(x):
    """Elementwise exact GELU (erf form) via Pallas. Any shape / float dtype."""
    orig_shape = x.shape
    dtype = x.dtype
    n = x.size
    if n == 0:
        return x

    itemsize = jnp.dtype(dtype).itemsize
    sub = _sublane_multiple(dtype)
    target_block_bytes, vmem_limit, min_steps = _chip_config()

    rows, width, pad = _factorize(n, sub)
    x_flat = jnp.reshape(x, (-1,))
    if pad:
        x_flat = jnp.pad(x_flat, (0, pad))  # gelu(0) == 0; tail sliced off below
    x2d = jnp.reshape(x_flat, (rows, width))

    block_rows = _choose_block_rows(rows, width, itemsize, sub, min_steps,
                                    target_block_bytes)
    grid = (pl.cdiv(rows, block_rows),)

    n_eff = rows * width
    cost = pl.CostEstimate(
        flops=15 * n_eff,              # abs/fma chain + selects
        transcendentals=2 * n_eff,     # exp + divide per element (EUP)
        bytes_accessed=2 * n_eff * itemsize,
    )

    out2d = pl.pallas_call(
        _gelu_erf_kernel,
        out_shape=jax.ShapeDtypeStruct((rows, width), dtype),
        grid_spec=pl.GridSpec(
            grid=grid,
            in_specs=[pl.BlockSpec((block_rows, width), lambda i: (i, 0))],
            out_specs=pl.BlockSpec((block_rows, width), lambda i: (i, 0)),
        ),
        compiler_params=pltpu.CompilerParams(
            dimension_semantics=("parallel",),
            vmem_limit_bytes=vmem_limit,
        ),
        cost_estimate=cost,
    )(x2d)

    out_flat = jnp.reshape(out2d, (-1,))
    if pad:
        out_flat = out_flat[:n]
    return jnp.reshape(out_flat, orig_shape)


if __name__ == "__main__":
    key = jax.random.PRNGKey(0)
    # typical NCHW activation: batch=2, channels=4, spatial=16x16
    x = jax.random.normal(key, (2, 4, 16, 16), dtype=jnp.float32)

    y = gelu_erf(x)
    jax.block_until_ready(y)

    # correctness check vs plain-JAX exact-erf reference
    ref = x * 0.5 * (1.0 + lax.erf(x / math.sqrt(2.0)))
    assert y.shape == x.shape and y.dtype == x.dtype
    assert jnp.max(jnp.abs(y - ref)) < 2e-6  # A&S 7.1.26 erf error ~1.5e-7

    print("KERNEL_OK")
</pallas_src>

<mosaic_0001>
module attributes {stable_mosaic.version = 11 : i64} {
  func.func @_gelu_erf_kernel(%arg0: i32, %arg1: memref<8x256xf32, #tpu.memory_space<vmem>>, %arg2: memref<8x256xf32, #tpu.memory_space<vmem>>) attributes {dimension_semantics = [#tpu.dimension_semantics<parallel>], iteration_bounds = array<i64: 1>, scalar_prefetch = 0 : i64, scratch_operands = 0 : i64, tpu.core_type = #tpu.core_type<tc>, window_params = [{transform_indices = @transform_0, window_bounds = array<i64: 8, 256>}, {transform_indices = @transform_1, window_bounds = array<i64: 8, 256>}]} {
    %c0 = arith.constant 0 : index
    %c0_0 = arith.constant 0 : index
    %0 = vector.load %arg1[%c0, %c0_0] : memref<8x256xf32, #tpu.memory_space<vmem>>, vector<8x256xf32>
    %cst = arith.constant 0.707106769 : f32
    %1 = vector.broadcast %cst : f32 to vector<8x256xf32>
    %2 = arith.mulf %0, %1 : vector<8x256xf32>
    %3 = math.absf %2 : vector<8x256xf32>
    %cst_1 = arith.constant 0.327591091 : f32
    %4 = vector.broadcast %cst_1 : f32 to vector<8x256xf32>
    %5 = arith.mulf %4, %3 : vector<8x256xf32>
    %cst_2 = arith.constant 1.000000e+00 : f32
    %6 = vector.broadcast %cst_2 : f32 to vector<8x256xf32>
    %7 = arith.addf %6, %5 : vector<8x256xf32>
    %cst_3 = arith.constant 1.000000e+00 : f32
    %8 = vector.broadcast %cst_3 : f32 to vector<8x256xf32>
    %9 = arith.divf %8, %7 : vector<8x256xf32>
    %cst_4 = arith.constant 1.06140542 : f32
    %10 = vector.broadcast %cst_4 : f32 to vector<8x256xf32>
    %11 = arith.mulf %9, %10 : vector<8x256xf32>
    %cst_5 = arith.constant -1.45315206 : f32
    %12 = vector.broadcast %cst_5 : f32 to vector<8x256xf32>
    %13 = arith.addf %12, %11 : vector<8x256xf32>
    %14 = arith.mulf %9, %13 : vector<8x256xf32>
    %cst_6 = arith.constant 1.42141378 : f32
    %15 = vector.broadcast %cst_6 : f32 to vector<8x256xf32>
    %16 = arith.addf %15, %14 : vector<8x256xf32>
    %17 = arith.mulf %9, %16 : vector<8x256xf32>
    %cst_7 = arith.constant -0.284496725 : f32
    %18 = vector.broadcast %cst_7 : f32 to vector<8x256xf32>
    %19 = arith.addf %18, %17 : vector<8x256xf32>
    %20 = arith.mulf %9, %19 : vector<8x256xf32>
    %cst_8 = arith.constant 0.254829586 : f32
    %21 = vector.broadcast %cst_8 : f32 to vector<8x256xf32>
    %22 = arith.addf %21, %20 : vector<8x256xf32>
    %23 = arith.mulf %9, %22 : vector<8x256xf32>
    %24 = arith.mulf %3, %3 : vector<8x256xf32>
    %cst_9 = arith.constant 0.000000e+00 : f32
    %25 = vector.broadcast %cst_9 : f32 to vector<8x256xf32>
    %26 = arith.subf %25, %24 : vector<8x256xf32>
    %27 = math.exp %26 : vector<8x256xf32>
    %28 = arith.mulf %23, %27 : vector<8x256xf32>
    %cst_10 = arith.constant 1.000000e+00 : f32
    %29 = vector.broadcast %cst_10 : f32 to vector<8x256xf32>
    %30 = arith.subf %29, %28 : vector<8x256xf32>
    %cst_11 = arith.constant 0.000000e+00 : f32
    %31 = vector.broadcast %cst_11 : f32 to vector<8x256xf32>
    %32 = arith.cmpf olt, %2, %31 : vector<8x256xf32>
    %cst_12 = arith.constant 0.000000e+00 : f32
    %33 = vector.broadcast %cst_12 : f32 to vector<8x256xf32>
    %34 = arith.subf %33, %30 : vector<8x256xf32>
    %35 = arith.select %32, %34, %30 : vector<8x256xi1>, vector<8x256xf32>
    %cst_13 = arith.constant 1.000000e+00 : f32
    %36 = vector.broadcast %cst_13 : f32 to vector<8x256xf32>
    %37 = arith.addf %36, %35 : vector<8x256xf32>
    %cst_14 = arith.constant 5.000000e-01 : f32
    %38 = vector.broadcast %cst_14 : f32 to vector<8x256xf32>
    %39 = arith.mulf %38, %37 : vector<8x256xf32>
    %40 = arith.mulf %0, %39 : vector<8x256xf32>
    %c0_15 = arith.constant 0 : index
    %c0_16 = arith.constant 0 : index
    %41 = vector.load %arg2[%c0_15, %c0_16] : memref<8x256xf32, #tpu.memory_space<vmem>>, vector<8x256xf32>
    tpu.vector_store %arg2[%c0_15, %c0_16], %40 {strides = array<i32>} : memref<8x256xf32, #tpu.memory_space<vmem>>, vector<8x256xf32>,
    return
  }
  func.func @transform_0(%arg0: i32) -> (i32, i32) {
    %c0_i32 = arith.constant 0 : i32
    %c0_i32_0 = arith.constant 0 : i32
    return %arg0, %c0_i32 : i32, i32
  }
  func.func @transform_1(%arg0: i32) -> (i32, i32) {
    %c0_i32 = arith.constant 0 : i32
    %c0_i32_0 = arith.constant 0 : i32
    return %arg0, %c0_i32 : i32, i32
  }
}

</mosaic_0001>

<llo_original>
// kernel: tpu_custom_call.1
$region0: #{tpu_custom_call.1}
  #allocation0 [shape = 'u32[]', space=smem, size = 0x4, offset = 0x4, fixed_abs, tag = 'smem constant byte address 0x4 - core index']
  #allocation1 [shape = 'u32[144,128]{1,0:T(1,128)}', space=vmem, size = 0x12000, scoped, tag = 'internal scratch']
  %s0 = inlined_call_operand.hbm [shape: f32[8,256], index: 0, kind: input, shape index: {}]
  %s1 = inlined_call_operand.hbm [shape: f32[8,256], index: 1, kind: output, shape index: {}]
  %s2 = sld [smem:[#allocation0]]
  $region18: #{tpu_custom_call.1} parent=0
    _
  %s4 = ssub.s32 1, %s2
  %s5 = scalar_select 0, %s4, %s2
  $region1: #{tpu_custom_call.1} parent=0
    #allocation2 [shape = 'u8[8192]{0}', space=vmem, size = 0x2000, scoped, tag = 'input window, operand 0, single buffered']
    #allocation3 [shape = 's32[1]{0}', space=sflag, size = 0x4, scoped, tag = 'scoped memory for tpu_custom_call.1']
    #allocation4 [shape = 's32[1]{0}', space=sflag, size = 0x4, scoped, tag = 'scoped memory for tpu_custom_call.1']
    #allocation5 [shape = 'u8[8192]{0}', space=vmem, size = 0x2000, scoped, tag = 'output window, operand 0, single buffered']
    %6 = vsyncpa [#allocation3], 0
    %7 = vsyncpa [#allocation4], 0
    // Predicated region
    $region2: #{tpu_custom_call.1} parent=1 // pred_check
      _
    $region3: #{tpu_custom_call.1} parent=1 // pred_check_branch
      %9 = sbr.rel (0) target = $region5
    $region4: #{tpu_custom_call.1} parent=1 // pred_region
      %s11 = ssub.s32 256, 256
      %12 = vsyncadd [#allocation3], %s11
      %s14 = sshll.u32 [#allocation2], 4
      %s15 = int_to_ptr.vmem [resolvable:$true] %s14
      %17 = dma.hbm_to_vmem [thread:$0]  %s0, 256, %s15, [#allocation3]
    $region5: #{tpu_custom_call.1} parent=1 // pred_fallthru
      _
    // Predicated region
    $region6: #{tpu_custom_call.1} parent=1 // pred_check
      _
    $region7: #{tpu_custom_call.1} parent=1 // pred_check_branch
      %19 = sbr.rel (0) target = $region9
    $region8: #{tpu_custom_call.1} parent=1 // pred_region
      %20 = dma.done [#allocation3], 256
    $region9: #{tpu_custom_call.1} parent=1 // pred_fallthru
      _
    %v21 = vld [vmem:[#allocation2] sm:$0xff]
    %v22 = vld [vmem:[#allocation2 + $0x8] sm:$0xff]
    %v23 = vmul.f32 %v21, 0.70710677
    %v24 = vmul.f32 %v22, 0.70710677
    %v25 = vand.u32 2147483647, %v23
    %v26 = vand.u32 2147483647, %v24
    %v27 = vmul.f32 %v25, 0.3275911
    %v28 = vmul.f32 %v26, 0.3275911
    %v29 = vadd.f32 %v27, 1.0
    %v30 = vadd.f32 %v28, 1.0
    %v31 = vrcp.pop %v29
    %v32 = vmul.f32 1.0, %v31
    %v33 = vrcp.pop %v30
    %v34 = vmul.f32 1.0, %v33
    %v35 = vmul.f32 %v32, 1.0614054
    %v36 = vmul.f32 %v34, 1.0614054
    %v37 = vadd.f32 %v35, -1.4531521
    %v38 = vadd.f32 %v36, -1.4531521
    %v39 = vmul.f32 %v32, %v37
    %v40 = vmul.f32 %v34, %v38
    %v41 = vadd.f32 %v39, 1.4214138
    %v42 = vadd.f32 %v40, 1.4214138
    %v43 = vmul.f32 %v32, %v41
    %v44 = vmul.f32 %v34, %v42
    %v45 = vadd.f32 %v43, -0.28449672
    %v46 = vadd.f32 %v44, -0.28449672
    %v47 = vmul.f32 %v32, %v45
    %v48 = vmul.f32 %v34, %v46
    %v49 = vadd.f32 %v47, 0.2548296
    %v50 = vadd.f32 %v48, 0.2548296
    %v51 = vmul.f32 %v32, %v49
    %v52 = vmul.f32 %v34, %v50
    %v53 = vmul.f32 %v25, %v25
    %v54 = vmul.f32 %v26, %v26
    %v55 = vsub.f32 0.0, %v53
    %v56 = vsub.f32 0.0, %v54
    %v57 = vmul.f32 %v55, 1.442695
    %v58 = vpow.pop %v57
    %v59 = vmul.f32 %v56, 1.442695
    %v60 = vpow.pop %v59
    %v61 = vmul.f32 %v51, %v58
    %v62 = vmul.f32 %v52, %v60
    %v63 = vsub.f32 1.0, %v61
    %v64 = vsub.f32 1.0, %v62
    %vm65 = vcmp.lt.f32.partialorder %v23, 0.0
    %vm66 = vcmp.lt.f32.partialorder %v24, 0.0
    %v67 = vsub.f32 0.0, %v63
    %v68 = vsub.f32 0.0, %v64
    %v69 = vsel %vm65, %v67, %v63
    %v70 = vsel %vm66, %v68, %v64
    %v71 = vadd.f32 %v69, 1.0
    %v72 = vadd.f32 %v70, 1.0
    %v73 = vmul.f32 %v71, 0.5
    %v74 = vmul.f32 %v72, 0.5
    %v75 = vmul.f32 %v21, %v73
    %v76 = vmul.f32 %v22, %v74
    %77 = vst [vmem:[#allocation5] sm:$0xff] %v75
    %78 = vst [vmem:[#allocation5 + $0x8] sm:$0xff] %v76
    // Predicated region
    $region10: #{tpu_custom_call.1} parent=1 // pred_check
      _
    $region11: #{tpu_custom_call.1} parent=1 // pred_check_branch
      %80 = sbr.rel (0) target = $region13
    $region12: #{tpu_custom_call.1} parent=1 // pred_region
      %s82 = ssub.s32 256, 256
      %83 = vsyncadd [#allocation4], %s82
      %s85 = sshll.u32 [#allocation5], 4
      %s86 = int_to_ptr.vmem [resolvable:$true] %s85
      %88 = dma.vmem_to_hbm [thread:$0]  %s86, 256, %s1, [#allocation4]
    $region13: #{tpu_custom_call.1} parent=1 // pred_fallthru
      _
    // Predicated region
    $region14: #{tpu_custom_call.1} parent=1 // pred_check
      _
    $region15: #{tpu_custom_call.1} parent=1 // pred_check_branch
      %90 = sbr.rel (0) target = $region17
    $region16: #{tpu_custom_call.1} parent=1 // pred_region
      %91 = dma.done [#allocation4], 256
    $region17: #{tpu_custom_call.1} parent=1 // pred_fallthru
      _
    %92 = vsyncpa [#allocation3], 1
    %93 = vsyncpa [#allocation4], 1

</llo_original>
